<compile_context>
chip_gen: v7x
topology: tpu7x:2x2x1
jax: 0.10.0
libtpu: 0.0.40
codegen_flags: <defaults>
</compile_context>

<pallas_src>
import functools

import jax
import jax.numpy as jnp
from jax.experimental import pallas as pl
from jax.experimental.pallas import tpu as pltpu

_MAX_SINGLE_K = 8192        # up to this D: one feature block (= full D, no K grid axis)
_K_TILE = 8192              # K tile (multiple of 128) when D is larger
_MAX_TILE_BYTES = 12 << 20  # x-tile ceiling
_MIN_TILE_BYTES = 2 << 20   # x-tile floor


def _round_up(v, m):
    return ((v + m - 1) // m) * m


def _vmem_limit_bytes():
    cap = 64 << 20  # conservative fallback = v7x per-core physical VMEM
    try:
        cap = int(pltpu.get_tpu_info().vmem_capacity_bytes)
    except Exception:
        pass
    # Keep ~25% headroom for compiler-internal scratch; never below the 32 MiB default.
    return int(max(32 << 20, min((cap * 3) // 4, 100 << 20)))


def _choose_tiles(B, D, itemsize, vmem_limit):
    if D <= _MAX_SINGLE_K:
        tk = D            # block last dim == full feature dim -> no 128-divisibility needed
    else:
        tk = _K_TILE      # multiple of 128
    nk = -(-D // tk)
    # x tile ~ vmem_limit/6: 2x double-buffered input + ~2x tile-sized elementwise temps.
    tile_bytes = max(_MIN_TILE_BYTES, min(_MAX_TILE_BYTES, vmem_limit // 6))
    rows = max(1, tile_bytes // (tk * itemsize))
    tb = max(8, (rows // 8) * 8)          # sublane multiple
    tb = min(tb, _round_up(B, 8))         # don't over-tile small batches
    nb = -(-B // tb)
    return tb, tk, nb, nk


def _logreg_kernel(x_ref, w_ref, b_ref, o_ref, acc_ref, *, true_d, tk):
    # x_ref: (TB, TK) VMEM; w_ref: (1, TK) VMEM; b_ref: (1, 1) SMEM;
    # o_ref: (TB, 1) VMEM; acc_ref: (TB, 1) f32 VMEM scratch (resident across k).
    k = pl.program_id(1)

    @pl.when(k == 0)
    def _():
        acc_ref[...] = jnp.zeros_like(acc_ref)

    x = x_ref[...].astype(jnp.float32)
    w = w_ref[...].astype(jnp.float32)
    prod = x * w                                   # VPU; (1, TK) row broadcasts over sublanes
    if true_d % tk != 0:
        # The last K block extends past the real feature dim; those boundary elements are
        # garbage.  Mask the *product* with a select so NaN/Inf garbage cannot leak through.
        col = jax.lax.broadcasted_iota(jnp.int32, (1, tk), 1) + k * tk
        prod = jnp.where(col < true_d, prod, 0.0)
    acc_ref[...] += jnp.sum(prod, axis=-1, keepdims=True)

    @pl.when(k == pl.num_programs(1) - 1)
    def _():
        logits = acc_ref[...] + b_ref[0, 0]
        o_ref[...] = jax.nn.sigmoid(logits).astype(o_ref.dtype)


def logistic_regression(x, weight, bias):
    """x: (B, D); weight: (1, D) (PyTorch nn.Linear layout); bias: (1,). Returns (B, 1)."""
    B, D = x.shape
    vmem_limit = _vmem_limit_bytes()
    tb, tk, nb, nk = _choose_tiles(B, D, x.dtype.itemsize, vmem_limit)
    b_pad = nb * tb

    b_smem = bias.reshape(1, 1).astype(jnp.float32)
    kernel = functools.partial(_logreg_kernel, true_d=D, tk=tk)

    out = pl.pallas_call(
        kernel,
        out_shape=jax.ShapeDtypeStruct((b_pad, 1), x.dtype),
        grid=(nb, nk),
        in_specs=[
            pl.BlockSpec((tb, tk), lambda i, k: (i, k)),   # x tile (double-buffered stream)
            pl.BlockSpec((1, tk), lambda i, k: (0, k)),    # weight row (resident when nk == 1)
            pl.BlockSpec(memory_space=pltpu.SMEM),         # bias scalar
        ],
        out_specs=pl.BlockSpec((tb, 1), lambda i, k: (i, 0)),
        scratch_shapes=[pltpu.VMEM((tb, 1), jnp.float32)],
        compiler_params=pltpu.CompilerParams(
            dimension_semantics=("parallel", "arbitrary"),
            vmem_limit_bytes=vmem_limit,
        ),
    )(x, weight, b_smem)

    return out[:B]


def _reference(x, w, b):
    # Elementwise form of x @ w.T + b (identical math, avoids MXU precision differences).
    return jax.nn.sigmoid(jnp.sum(x * w, axis=-1, keepdims=True) + b)


if __name__ == "__main__":
    key = jax.random.PRNGKey(0)
    kx, kw, kb = jax.random.split(key, 3)

    # Small demo shape consistent with the module.
    batch, input_dim = 8, 32
    x = jax.random.normal(kx, (batch, input_dim), dtype=jnp.float32)
    bound = 1.0 / float(input_dim) ** 0.5
    weight = jax.random.uniform(kw, (1, input_dim), minval=-bound, maxval=bound, dtype=jnp.float32)
    bias = jax.random.uniform(kb, (1,), minval=-bound, maxval=bound, dtype=jnp.float32)

    out = logistic_regression(x, weight, bias)
    jax.block_until_ready(out)
    assert out.shape == (batch, 1)
    assert jnp.allclose(out, _reference(x, weight, bias), atol=1e-5), "mismatch (small shape)"

    # Ragged batch (not a multiple of 8) and D not a multiple of 128 -> no-pad boundary path.
    B2, D2 = 300, 160
    x2 = jax.random.normal(kx, (B2, D2), dtype=jnp.float32)
    w2 = jax.random.uniform(kw, (1, D2), minval=-0.1, maxval=0.1, dtype=jnp.float32)
    b2 = jax.random.uniform(kb, (1,), minval=-0.1, maxval=0.1, dtype=jnp.float32)
    out2 = logistic_regression(x2, w2, b2)
    jax.block_until_ready(out2)
    assert out2.shape == (B2, 1)
    assert jnp.allclose(out2, _reference(x2, w2, b2), atol=1e-4), "mismatch (ragged shape)"

    # Large feature dim exercises the K-split accumulator + column-mask path.
    B3, D3 = 16, 9000
    x3 = jax.random.normal(kx, (B3, D3), dtype=jnp.float32)
    w3 = jax.random.uniform(kw, (1, D3), minval=-0.05, maxval=0.05, dtype=jnp.float32)
    b3 = jax.random.uniform(kb, (1,), minval=-0.05, maxval=0.05, dtype=jnp.float32)
    out3 = logistic_regression(x3, w3, b3)
    jax.block_until_ready(out3)
    assert out3.shape == (B3, 1)
    assert jnp.allclose(out3, _reference(x3, w3, b3), atol=1e-4), "mismatch (K-split shape)"

    print("KERNEL_OK")
</pallas_src>

<mosaic_0001>
module attributes {stable_mosaic.version = 11 : i64} {
  func.func @_logreg_kernel(%arg0: i32, %arg1: i32, %arg2: memref<8x32xf32, #tpu.memory_space<vmem>>, %arg3: memref<1x32xf32, #tpu.memory_space<vmem>>, %arg4: memref<1x1xf32, #tpu.memory_space<smem>>, %arg5: memref<8x1xf32, #tpu.memory_space<vmem>>, %arg6: memref<8x1xf32, #tpu.memory_space<vmem>>) attributes {dimension_semantics = [#tpu.dimension_semantics<parallel>, #tpu.dimension_semantics<arbitrary>], iteration_bounds = array<i64: 1, 1>, scalar_prefetch = 0 : i64, scratch_operands = 1 : i64, tpu.core_type = #tpu.core_type<tc>, window_params = [{transform_indices = @transform_0, window_bounds = array<i64: 8, 32>}, {transform_indices = @transform_1, window_bounds = array<i64: 1, 32>}, {transform_indices = @transform_2, window_bounds = array<i64: 1, 1>}, {transform_indices = @transform_3, window_bounds = array<i64: 8, 1>}]} {
    %c0_i32 = arith.constant 0 : i32
    %0 = arith.cmpi eq, %arg1, %c0_i32 : i32
    %1 = arith.extui %0 : i1 to i32
    %c0_i32_0 = arith.constant 0 : i32
    %2 = arith.cmpi ne, %1, %c0_i32_0 : i32
    scf.if %2 {
      %cst_10 = arith.constant 0.000000e+00 : f32
      %15 = vector.broadcast %cst_10 : f32 to vector<8x1xf32>
      %c0_11 = arith.constant 0 : index
      %c0_12 = arith.constant 0 : index
      %16 = vector.load %arg6[%c0_11, %c0_12] : memref<8x1xf32, #tpu.memory_space<vmem>>, vector<8x1xf32>
      tpu.vector_store %arg6[%c0_11, %c0_12], %15 {strides = array<i32>} : memref<8x1xf32, #tpu.memory_space<vmem>>, vector<8x1xf32>,
    } else {
    }
    %c0 = arith.constant 0 : index
    %c0_1 = arith.constant 0 : index
    %3 = vector.load %arg2[%c0, %c0_1] : memref<8x32xf32, #tpu.memory_space<vmem>>, vector<8x32xf32>
    %c0_2 = arith.constant 0 : index
    %c0_3 = arith.constant 0 : index
    %4 = vector.load %arg3[%c0_2, %c0_3] : memref<1x32xf32, #tpu.memory_space<vmem>>, vector<1x32xf32>
    %5 = vector.broadcast %4 : vector<1x32xf32> to vector<8x32xf32>
    %6 = arith.mulf %3, %5 : vector<8x32xf32>
    %c0_4 = arith.constant 0 : index
    %c0_5 = arith.constant 0 : index
    %7 = vector.load %arg6[%c0_4, %c0_5] : memref<8x1xf32, #tpu.memory_space<vmem>>, vector<8x1xf32>
    %cst = arith.constant dense<0.000000e+00> : vector<8xf32>
    %8 = vector.multi_reduction <add>, %6, %cst [1] : vector<8x32xf32> to vector<8xf32>
    %9 = vector.shape_cast %8 : vector<8xf32> to vector<8x1xf32>
    %10 = arith.addf %7, %9 : vector<8x1xf32>
    %c0_6 = arith.constant 0 : index
    %c0_7 = arith.constant 0 : index
    %11 = vector.load %arg6[%c0_6, %c0_7] : memref<8x1xf32, #tpu.memory_space<vmem>>, vector<8x1xf32>
    tpu.vector_store %arg6[%c0_6, %c0_7], %10 {strides = array<i32>} : memref<8x1xf32, #tpu.memory_space<vmem>>, vector<8x1xf32>,
    %c0_i32_8 = arith.constant 0 : i32
    %12 = arith.cmpi eq, %arg1, %c0_i32_8 : i32
    %13 = arith.extui %12 : i1 to i32
    %c0_i32_9 = arith.constant 0 : i32
    %14 = arith.cmpi ne, %13, %c0_i32_9 : i32
    scf.if %14 {
      %c0_10 = arith.constant 0 : index
      %c0_11 = arith.constant 0 : index
      %15 = vector.load %arg6[%c0_10, %c0_11] : memref<8x1xf32, #tpu.memory_space<vmem>>, vector<8x1xf32>
      %c0_12 = arith.constant 0 : index
      %c0_13 = arith.constant 0 : index
      %16 = memref.load %arg4[%c0_12, %c0_13] : memref<1x1xf32, #tpu.memory_space<smem>>
      %17 = vector.broadcast %16 : f32 to vector<8x1xf32>
      %18 = arith.addf %15, %17 : vector<8x1xf32>
      %19 = arith.negf %18 : vector<8x1xf32>
      %20 = math.exp %19 : vector<8x1xf32>
      %cst_14 = arith.constant 1.000000e+00 : f32
      %21 = vector.broadcast %cst_14 : f32 to vector<8x1xf32>
      %22 = arith.addf %21, %20 : vector<8x1xf32>
      %23 = arith.divf %21, %22 : vector<8x1xf32>
      %c0_15 = arith.constant 0 : index
      %c0_16 = arith.constant 0 : index
      %24 = vector.load %arg5[%c0_15, %c0_16] : memref<8x1xf32, #tpu.memory_space<vmem>>, vector<8x1xf32>
      tpu.vector_store %arg5[%c0_15, %c0_16], %23 {strides = array<i32>} : memref<8x1xf32, #tpu.memory_space<vmem>>, vector<8x1xf32>,
    } else {
    }
    return
  }
  func.func @transform_0(%arg0: i32, %arg1: i32) -> (i32, i32) {
    %c0_i32 = arith.constant 0 : i32
    return %arg0, %arg1 : i32, i32
  }
  func.func @transform_1(%arg0: i32, %arg1: i32) -> (i32, i32) {
    %c0_i32 = arith.constant 0 : i32
    %c0_i32_0 = arith.constant 0 : i32
    return %c0_i32, %arg1 : i32, i32
  }
  func.func @transform_2(%arg0: i32, %arg1: i32) -> (i32, i32) {
    %c0_i32 = arith.constant 0 : i32
    %c0_i32_0 = arith.constant 0 : i32
    %c0_i32_1 = arith.constant 0 : i32
    return %c0_i32, %c0_i32_0 : i32, i32
  }
  func.func @transform_3(%arg0: i32, %arg1: i32) -> (i32, i32) {
    %c0_i32 = arith.constant 0 : i32
    %c0_i32_0 = arith.constant 0 : i32
    return %arg0, %c0_i32 : i32, i32
  }
}

</mosaic_0001>

<llo_original>
// kernel: tpu_custom_call.1
$region0: #{tpu_custom_call.1}
  #allocation0 [shape = 'u32[]', space=smem, size = 0x4, offset = 0x4, fixed_abs, tag = 'smem constant byte address 0x4 - core index']
  #allocation1 [shape = 'u32[144,128]{1,0:T(1,128)}', space=vmem, size = 0x12000, scoped, tag = 'internal scratch']
  #allocation2 [shape = 'f32[8,1]{1,0:T(8,128)}', space=vmem, size = 0x1000, scoped, tag = 'scratch operand']
  #allocation3 [shape = 'f32[1,1]{1,0:T(1,128)S(6)}', space=smem, size = 0x200, scoped, tag = 'scoped memory for tpu_custom_call.1']
  %s0 = inlined_call_operand.hbm [shape: f32[8,32], index: 0, kind: input, shape index: {}]
  %s1 = inlined_call_operand.vmem [shape: f32[1,32], index: 1, kind: input, shape index: {}]
  %s2 = inlined_call_operand.<no memory space> [shape: f32[1,1], index: 2, kind: input, shape index: {}]
  %s3 = inlined_call_operand.vmem [shape: f32[8,1], index: 3, kind: output, shape index: {}]
  %s4 = sld [smem:[#allocation0]]
  $region34: #{tpu_custom_call.1} parent=0
    _
  %s6 = ssub.s32 1, %s4
  %s7 = scalar_select 0, %s6, %s4
  %8 = sst [smem:[#allocation3]] %s2
  $region1: #{tpu_custom_call.1} parent=0
    #allocation4 [shape = 'u8[4096]{0}', space=vmem, size = 0x1000, scoped, tag = 'input window, operand 0, single buffered']
    #allocation5 [shape = 's32[1]{0}', space=sflag, size = 0x4, scoped, tag = 'scoped memory for tpu_custom_call.1']
    %9 = vsyncpa [#allocation5], 0
    // Predicated region
    $region2: #{tpu_custom_call.1} parent=1 // pred_check
      _
    $region3: #{tpu_custom_call.1} parent=1 // pred_check_branch
      %11 = sbr.rel (0) target = $region5
    $region4: #{tpu_custom_call.1} parent=1 // pred_region
      %s13 = ssub.s32 128, 128
      %14 = vsyncadd [#allocation5], %s13
      %s16 = sshll.u32 [#allocation4], 4
      %s17 = int_to_ptr.vmem [resolvable:$true] %s16
      %19 = dma.hbm_to_vmem [thread:$0]  %s0, 128, %s17, [#allocation5]
    $region5: #{tpu_custom_call.1} parent=1 // pred_fallthru
      _
    // Predicated region
    $region6: #{tpu_custom_call.1} parent=1 // pred_check
      _
    $region7: #{tpu_custom_call.1} parent=1 // pred_check_branch
      %21 = sbr.rel (0) target = $region9
    $region8: #{tpu_custom_call.1} parent=1 // pred_region
      _
    $region9: #{tpu_custom_call.1} parent=1 // pred_fallthru
      _
    // Predicated region
    $region10: #{tpu_custom_call.1} parent=1 // pred_check
      _
    $region11: #{tpu_custom_call.1} parent=1 // pred_check_branch
      %23 = sbr.rel (0) target = $region13
    $region12: #{tpu_custom_call.1} parent=1 // pred_region
      _
    $region13: #{tpu_custom_call.1} parent=1 // pred_fallthru
      _
    // Predicated region
    $region14: #{tpu_custom_call.1} parent=1 // pred_check
      _
    $region15: #{tpu_custom_call.1} parent=1 // pred_check_branch
      %25 = sbr.rel (0) target = $region17
    $region16: #{tpu_custom_call.1} parent=1 // pred_region
      %26 = dma.done [#allocation5], 128
    $region17: #{tpu_custom_call.1} parent=1 // pred_fallthru
      _
    %p27 = scmp.eq.s32.totalorder 0, 0
    // Predicated region
    $region18: #{tpu_custom_call.1} parent=1 // pred_check
      %p28 = pneg %p27
    $region19: #{tpu_custom_call.1} parent=1 // pred_check_branch
      %30 = sbr.rel (%p28) target = $region21
    $region20: #{tpu_custom_call.1} parent=1 // pred_region
      %vm31 = vcmask 7168
      %32 = vst.msk [vmem:[#allocation2] sm:$0xff] %vm31, 0.0
    $region21: #{tpu_custom_call.1} parent=1 // pred_fallthru
      _
    %v33 = vld [vmem:[#allocation4] sm:$0xff]
    %v34 = vld [vmem:[%s1] sm:$0x1]
    %v36 = vlaneseq
    %v37 = vshrl.u32 %v36, 7
    %v38 = vsub.s32 0, %v37
    %v39 = vrot.slane %v34, %v38
    %v41 = vmul.f32 %v33, %v39
    %v42 = vld [vmem:[#allocation2] sm:$0xff]
    %vm43 = vcmask 261120
    %v44 = vsel %vm43, %v41, 0.0
    %45 = vadd.xlane.f32.xlu0 %v44
    %v46 = vpop.xlane.xlu0 %45
    %v47 = vadd.f32 %v42, %v46
    %vm48 = vcmask 7168
    %49 = vst.msk [vmem:[#allocation2] sm:$0xff] %vm48, %v47
    // Predicated region
    $region22: #{tpu_custom_call.1} parent=1 // pred_check
      %p50 = pneg %p27
    $region23: #{tpu_custom_call.1} parent=1 // pred_check_branch
      %52 = sbr.rel (%p50) target = $region25
    $region24: #{tpu_custom_call.1} parent=1 // pred_region
      %v53 = vld [vmem:[#allocation2] sm:$0xff]
      %s54 = sld [smem:[#allocation3]]
      %v55 = vstv %s54
      %v56 = vadd.f32 %v53, %v55
      %v57 = vxor.u32 %v56, 2147483648
      %v58 = vmul.f32 %v57, 1.442695
      %v59 = vpow.pop %v58
      %v60 = vadd.f32 %v59, 1.0
      %v61 = vrcp.pop %v60
      %v62 = vmul.f32 1.0, %v61
      %63 = vst.msk [vmem:[%s3] sm:$0xff] %vm48, %v62
    $region25: #{tpu_custom_call.1} parent=1 // pred_fallthru
      _
    // Predicated region
    $region26: #{tpu_custom_call.1} parent=1 // pred_check
      _
    $region27: #{tpu_custom_call.1} parent=1 // pred_check_branch
      %65 = sbr.rel (0) target = $region29
    $region28: #{tpu_custom_call.1} parent=1 // pred_region
      _
    $region29: #{tpu_custom_call.1} parent=1 // pred_fallthru
      _
    // Predicated region
    $region30: #{tpu_custom_call.1} parent=1 // pred_check
      _
    $region31: #{tpu_custom_call.1} parent=1 // pred_check_branch
      %67 = sbr.rel (0) target = $region33
    $region32: #{tpu_custom_call.1} parent=1 // pred_region
      _
    $region33: #{tpu_custom_call.1} parent=1 // pred_fallthru
      _
    %68 = vsyncpa [#allocation5], 1

</llo_original>
